<compile_context>
chip_gen: v7x
topology: tpu7x:2x2x1
jax: 0.10.0
libtpu: 0.0.40
codegen_flags: <defaults>
</compile_context>

<pallas_src>
import functools

import jax
import jax.numpy as jnp
from jax.experimental import pallas as pl
from jax.experimental.pallas import tpu as pltpu


def _largest_divisor_leq(n, cap):
    for d in range(min(n, cap), 0, -1):
        if n % d == 0:
            return d
    return 1


def gnn_kernel(x_ref, adj_ref, w_ref, b_ref, o_ref, support_ref, *, matmul_dtype):
    # Grid = (batch tiles, adjacency row tiles).  The row axis is "arbitrary":
    # the support scratch is computed once per batch tile (row tile 0) and
    # reused for every adjacency row tile of that batch tile.
    @pl.when(pl.program_id(1) == 0)
    def _():
        x = x_ref[...].astype(matmul_dtype)            # (TB, N, F)
        w = w_ref[...].astype(matmul_dtype)            # (TB, F, D)
        support_ref[...] = jnp.einsum(
            "bnf,bfd->bnd", x, w,
            preferred_element_type=jnp.float32).astype(matmul_dtype)

    adj = adj_ref[...].astype(matmul_dtype)            # (TB, TM, N)
    out = jnp.einsum(
        "bmn,bnd->bmd", adj, support_ref[...],
        preferred_element_type=jnp.float32)            # (TB, TM, D) f32
    out = out + b_ref[...]                             # bias (1, D) broadcasts

    # doublerelu == clamp to [0, 1]  (elementwise math stays f32)
    out = jnp.clip(out, 0.0, 1.0)

    # Row-normalize over the feature axis (PyTorch: x / x.sum(axis=2).unsqueeze(2)).
    # NOTE: like the PyTorch reference, an all-zero row yields NaN/Inf.
    denom = jnp.sum(out, axis=-1, keepdims=True)
    o_ref[...] = out * pl.reciprocal(denom, approx=False)


def gnn_forward(x, adj, weight, bias, *, matmul_dtype=jnp.bfloat16):
    B, N, F = x.shape
    D = weight.shape[-1]
    bias2d = bias.reshape(1, D).astype(jnp.float32)

    # Batch tile: process several batch elements per grid step.
    TB = _largest_divisor_leq(B, 8)
    # Adjacency row tile: bound the (TB, TM, N) adj block for large N
    # (keeps VMEM in check on v7x); full N when small or non-divisible.
    TM = 512 if (N > 512 and N % 512 == 0) else N

    grid = (B // TB, pl.cdiv(N, TM))
    kernel = functools.partial(gnn_kernel, matmul_dtype=matmul_dtype)

    return pl.pallas_call(
        kernel,
        out_shape=jax.ShapeDtypeStruct((B, N, D), jnp.float32),
        grid_spec=pltpu.PrefetchScalarGridSpec(
            num_scalar_prefetch=0,
            grid=grid,
            in_specs=[
                pl.BlockSpec((TB, N, F), lambda b, r: (b, 0, 0)),   # x (full rows)
                pl.BlockSpec((TB, TM, N), lambda b, r: (b, r, 0)),  # adj row tile
                pl.BlockSpec((TB, F, D), lambda b, r: (b, 0, 0)),   # per-batch weight
                pl.BlockSpec((1, D), lambda b, r: (0, 0)),          # bias (shared)
            ],
            out_specs=pl.BlockSpec((TB, TM, D), lambda b, r: (b, r, 0)),
            scratch_shapes=[pltpu.VMEM((TB, N, D), matmul_dtype)],  # support cache
        ),
        compiler_params=pltpu.CompilerParams(
            # batch tiles are independent (megacore-shardable); row tiles must
            # run sequentially so the support scratch is valid.
            dimension_semantics=("parallel", "arbitrary"),
        ),
    )(x, adj, weight, bias2d)


def gnn_reference(x, adj, weight, bias):
    support = jnp.einsum("bnf,bfd->bnd", x, weight)
    out = jnp.einsum("bnm,bmd->bnd", adj, support) + bias[None, None, :]
    out = jnp.clip(out, 0.0, 1.0)
    return out / jnp.sum(out, axis=2, keepdims=True)


if __name__ == "__main__":
    B, N, F, D = 2, 8, 16, 32   # batch_size=2, nodes=8, nfeat=16, ndim=32

    key = jax.random.PRNGKey(0)
    kx, kadj, kw, kb = jax.random.split(key, 4)

    x = jax.random.normal(kx, (B, N, F), dtype=jnp.float32)
    # symmetric-ish non-negative adjacency with self loops
    a = jax.random.uniform(kadj, (B, N, N), dtype=jnp.float32)
    adj = 0.5 * (a + jnp.transpose(a, (0, 2, 1))) + jnp.eye(N)[None]

    # deterministic parameter init (GraphNeuralNet.__init__ shapes)
    weight = 0.1 * jax.random.normal(kw, (B, F, D), dtype=jnp.float32)
    bias = 0.1 * jax.random.normal(kb, (D,), dtype=jnp.float32)

    ref = gnn_reference(x, adj, weight, bias)

    # Exact-precision path (f32 matmuls): must match the f32 reference tightly.
    out_f32 = jax.block_until_ready(
        gnn_forward(x, adj, weight, bias, matmul_dtype=jnp.float32))
    assert out_f32.shape == (B, N, D)
    assert jnp.allclose(out_f32, ref, atol=1e-5, rtol=1e-5), "f32 path mismatch"

    # Fast path: bf16 MXU feeds, f32 accumulate + f32 elementwise math.
    out_bf16 = jax.block_until_ready(
        gnn_forward(x, adj, weight, bias, matmul_dtype=jnp.bfloat16))
    assert out_bf16.shape == (B, N, D)
    assert jnp.allclose(out_bf16, ref, atol=2e-2, rtol=2e-2), "bf16 path mismatch"

    print("KERNEL_OK")
</pallas_src>

<mosaic_0001>
module attributes {stable_mosaic.version = 11 : i64} {
  func.func @gnn_kernel(%arg0: i32, %arg1: i32, %arg2: memref<2x8x16xf32, #tpu.memory_space<vmem>>, %arg3: memref<2x8x8xf32, #tpu.memory_space<vmem>>, %arg4: memref<2x16x32xf32, #tpu.memory_space<vmem>>, %arg5: memref<1x32xf32, #tpu.memory_space<vmem>>, %arg6: memref<2x8x32xf32, #tpu.memory_space<vmem>>, %arg7: memref<2x8x32xf32, #tpu.memory_space<vmem>>) attributes {dimension_semantics = [#tpu.dimension_semantics<parallel>, #tpu.dimension_semantics<arbitrary>], iteration_bounds = array<i64: 1, 1>, scalar_prefetch = 0 : i64, scratch_operands = 1 : i64, tpu.core_type = #tpu.core_type<tc>, window_params = [{transform_indices = @transform_0, window_bounds = array<i64: 2, 8, 16>}, {transform_indices = @transform_1, window_bounds = array<i64: 2, 8, 8>}, {transform_indices = @transform_2, window_bounds = array<i64: 2, 16, 32>}, {pipeline_mode = #tpu.pipeline_mode<synchronous>, transform_indices = @transform_3, window_bounds = array<i64: 1, 32>}, {transform_indices = @transform_4, window_bounds = array<i64: 2, 8, 32>}]} {
    %c0_i32 = arith.constant 0 : i32
    %0 = arith.cmpi eq, %arg1, %c0_i32 : i32
    %1 = arith.extui %0 : i1 to i32
    %c0_i32_0 = arith.constant 0 : i32
    %2 = arith.cmpi ne, %1, %c0_i32_0 : i32
    scf.if %2 {
      %c0_14 = arith.constant 0 : index
      %c0_15 = arith.constant 0 : index
      %c0_16 = arith.constant 0 : index
      %20 = vector.load %arg2[%c0_14, %c0_15, %c0_16] : memref<2x8x16xf32, #tpu.memory_space<vmem>>, vector<2x8x16xf32>
      %c0_17 = arith.constant 0 : index
      %c0_18 = arith.constant 0 : index
      %c0_19 = arith.constant 0 : index
      %21 = vector.load %arg4[%c0_17, %c0_18, %c0_19] : memref<2x16x32xf32, #tpu.memory_space<vmem>>, vector<2x16x32xf32>
      "tpu.trace_start"() <{level = 10 : i32, message = "bnf,bfd->bnd"}> : () -> ()
      %cst_20 = arith.constant dense<0.000000e+00> : vector<2x8x32xf32>
      %22 = tpu.matmul %20, %21, %cst_20 {dimension_numbers = #tpu.dot_dimension_numbers<[2], [1], [1], [2], [0, 0, 0, 1, 1, 2], [0], [0]>} : vector<2x8x16xf32>, vector<2x16x32xf32>, vector<2x8x32xf32> -> vector<2x8x32xf32>
      "tpu.trace_stop"() : () -> ()
      %c0_21 = arith.constant 0 : index
      %c0_22 = arith.constant 0 : index
      %c0_23 = arith.constant 0 : index
      %23 = vector.load %arg7[%c0_21, %c0_22, %c0_23] : memref<2x8x32xf32, #tpu.memory_space<vmem>>, vector<2x8x32xf32>
      tpu.vector_store %arg7[%c0_21, %c0_22, %c0_23], %22 {strides = array<i32>} : memref<2x8x32xf32, #tpu.memory_space<vmem>>, vector<2x8x32xf32>,
    } else {
    }
    %c0 = arith.constant 0 : index
    %c0_1 = arith.constant 0 : index
    %c0_2 = arith.constant 0 : index
    %3 = vector.load %arg3[%c0, %c0_1, %c0_2] : memref<2x8x8xf32, #tpu.memory_space<vmem>>, vector<2x8x8xf32>
    %c0_3 = arith.constant 0 : index
    %c0_4 = arith.constant 0 : index
    %c0_5 = arith.constant 0 : index
    %4 = vector.load %arg7[%c0_3, %c0_4, %c0_5] : memref<2x8x32xf32, #tpu.memory_space<vmem>>, vector<2x8x32xf32>
    "tpu.trace_start"() <{level = 10 : i32, message = "bmn,bnd->bmd"}> : () -> ()
    %cst = arith.constant dense<0.000000e+00> : vector<2x8x32xf32>
    %5 = tpu.matmul %3, %4, %cst {dimension_numbers = #tpu.dot_dimension_numbers<[2], [1], [1], [2], [0, 0, 0, 1, 1, 2], [0], [0]>} : vector<2x8x8xf32>, vector<2x8x32xf32>, vector<2x8x32xf32> -> vector<2x8x32xf32>
    "tpu.trace_stop"() : () -> ()
    %c0_6 = arith.constant 0 : index
    %c0_7 = arith.constant 0 : index
    %6 = vector.load %arg5[%c0_6, %c0_7] : memref<1x32xf32, #tpu.memory_space<vmem>>, vector<1x32xf32>
    %7 = vector.shape_cast %6 : vector<1x32xf32> to vector<1x1x32xf32>
    %8 = vector.broadcast %7 : vector<1x1x32xf32> to vector<2x8x32xf32>
    %9 = arith.addf %5, %8 : vector<2x8x32xf32>
    %cst_8 = arith.constant 0.000000e+00 : f32
    %cst_9 = arith.constant 1.000000e+00 : f32
    %10 = vector.broadcast %cst_8 : f32 to vector<2x8x32xf32>
    %11 = arith.maximumf %10, %9 : vector<2x8x32xf32>
    %12 = vector.broadcast %cst_9 : f32 to vector<2x8x32xf32>
    %13 = arith.minimumf %12, %11 : vector<2x8x32xf32>
    %cst_10 = arith.constant dense<0.000000e+00> : vector<2x8xf32>
    %14 = vector.multi_reduction <add>, %13, %cst_10 [2] : vector<2x8x32xf32> to vector<2x8xf32>
    %15 = vector.shape_cast %14 : vector<2x8xf32> to vector<2x8x1xf32>
    %16 = tpu.reciprocal %15 : vector<2x8x1xf32> -> vector<2x8x1xf32>
    %17 = vector.broadcast %16 : vector<2x8x1xf32> to vector<2x8x32xf32>
    %18 = arith.mulf %13, %17 : vector<2x8x32xf32>
    %c0_11 = arith.constant 0 : index
    %c0_12 = arith.constant 0 : index
    %c0_13 = arith.constant 0 : index
    %19 = vector.load %arg6[%c0_11, %c0_12, %c0_13] : memref<2x8x32xf32, #tpu.memory_space<vmem>>, vector<2x8x32xf32>
    tpu.vector_store %arg6[%c0_11, %c0_12, %c0_13], %18 {strides = array<i32>} : memref<2x8x32xf32, #tpu.memory_space<vmem>>, vector<2x8x32xf32>,
    return
  }
  func.func @transform_0(%arg0: i32, %arg1: i32) -> (i32, i32, i32) {
    %c0_i32 = arith.constant 0 : i32
    %c0_i32_0 = arith.constant 0 : i32
    %c0_i32_1 = arith.constant 0 : i32
    return %arg0, %c0_i32, %c0_i32_0 : i32, i32, i32
  }
  func.func @transform_1(%arg0: i32, %arg1: i32) -> (i32, i32, i32) {
    %c0_i32 = arith.constant 0 : i32
    %c0_i32_0 = arith.constant 0 : i32
    return %arg0, %arg1, %c0_i32 : i32, i32, i32
  }
  func.func @transform_2(%arg0: i32, %arg1: i32) -> (i32, i32, i32) {
    %c0_i32 = arith.constant 0 : i32
    %c0_i32_0 = arith.constant 0 : i32
    %c0_i32_1 = arith.constant 0 : i32
    return %arg0, %c0_i32, %c0_i32_0 : i32, i32, i32
  }
  func.func @transform_3(%arg0: i32, %arg1: i32) -> (i32, i32) {
    %c0_i32 = arith.constant 0 : i32
    %c0_i32_0 = arith.constant 0 : i32
    %c0_i32_1 = arith.constant 0 : i32
    return %c0_i32, %c0_i32_0 : i32, i32
  }
  func.func @transform_4(%arg0: i32, %arg1: i32) -> (i32, i32, i32) {
    %c0_i32 = arith.constant 0 : i32
    %c0_i32_0 = arith.constant 0 : i32
    return %arg0, %arg1, %c0_i32 : i32, i32, i32
  }
}

</mosaic_0001>

<llo_original>
// kernel: tpu_custom_call.1
$region0: #{tpu_custom_call.1}
  #allocation0 [shape = 'u32[]', space=smem, size = 0x4, offset = 0x4, fixed_abs, tag = 'smem constant byte address 0x4 - core index']
  #allocation1 [shape = 'u32[144,128]{1,0:T(1,128)}', space=vmem, size = 0x12000, scoped, tag = 'internal scratch']
  #allocation2 [shape = 'f32[2,8,32]{2,1,0:T(8,128)}', space=vmem, size = 0x2000, scoped, tag = 'scratch operand']
  %s0 = inlined_call_operand.hbm [shape: f32[2,8,16], index: 0, kind: input, shape index: {}]
  %s1 = inlined_call_operand.hbm [shape: f32[2,8,8], index: 1, kind: input, shape index: {}]
  %s2 = inlined_call_operand.hbm [shape: f32[2,16,32], index: 2, kind: input, shape index: {}]
  %s3 = inlined_call_operand.vmem [shape: f32[1,32], index: 3, kind: input, shape index: {}]
  %s4 = inlined_call_operand.hbm [shape: f32[2,8,32], index: 4, kind: output, shape index: {}]
  %s5 = sld [smem:[#allocation0]]
  $region42: #{tpu_custom_call.1} parent=0
    _
  %s7 = ssub.s32 1, %s5
  %s8 = scalar_select 0, %s7, %s5
  $region1: #{tpu_custom_call.1} parent=0
    #allocation3 [shape = 'u8[8192]{0}', space=vmem, size = 0x2000, scoped, tag = 'input window, operand 0, single buffered']
    #allocation4 [shape = 's32[1]{0}', space=sflag, size = 0x4, scoped, tag = 'scoped memory for tpu_custom_call.1']
    #allocation5 [shape = 's32[1]{0}', space=sflag, size = 0x4, scoped, tag = 'scoped memory for tpu_custom_call.1']
    #allocation6 [shape = 'u8[8192]{0}', space=vmem, size = 0x2000, scoped, tag = 'input window, operand 1, single buffered']
    #allocation7 [shape = 's32[1]{0}', space=sflag, size = 0x4, scoped, tag = 'scoped memory for tpu_custom_call.1']
    #allocation8 [shape = 'u8[16384]{0}', space=vmem, size = 0x4000, scoped, tag = 'input window, operand 2, single buffered']
    #allocation9 [shape = 'u8[8192]{0}', space=vmem, size = 0x2000, scoped, tag = 'output window, operand 0, single buffered']
    %9 = vsyncpa [#allocation4], 0
    %10 = vsyncpa [#allocation7], 0
    %11 = vsyncpa [#allocation5], 0
    // Predicated region
    $region2: #{tpu_custom_call.1} parent=1 // pred_check
      _
    $region3: #{tpu_custom_call.1} parent=1 // pred_check_branch
      %13 = sbr.rel (0) target = $region5
    $region4: #{tpu_custom_call.1} parent=1 // pred_region
      %s15 = ssub.s32 256, 256
      %16 = vsyncadd [#allocation4], %s15
      %s17 = sshll.u32 [#allocation3], 4
      %s18 = int_to_ptr.vmem [resolvable:$true] %s17
      %23 = dma.hbm_to_vmem [thread:$0]  %s0, 256, %s18, [#allocation4], 128, 128, 8
    $region5: #{tpu_custom_call.1} parent=1 // pred_fallthru
      _
    // Predicated region
    $region6: #{tpu_custom_call.1} parent=1 // pred_check
      _
    $region7: #{tpu_custom_call.1} parent=1 // pred_check_branch
      %25 = sbr.rel (0) target = $region9
    $region8: #{tpu_custom_call.1} parent=1 // pred_region
      %s27 = ssub.s32 256, 256
      %28 = vsyncadd [#allocation7], %s27
      %s29 = sshll.u32 [#allocation6], 4
      %s30 = int_to_ptr.vmem [resolvable:$true] %s29
      %35 = dma.hbm_to_vmem [thread:$0]  %s1, 256, %s30, [#allocation7], 128, 128, 8
    $region9: #{tpu_custom_call.1} parent=1 // pred_fallthru
      _
    // Predicated region
    $region10: #{tpu_custom_call.1} parent=1 // pred_check
      _
    $region11: #{tpu_custom_call.1} parent=1 // pred_check_branch
      %37 = sbr.rel (0) target = $region13
    $region12: #{tpu_custom_call.1} parent=1 // pred_region
      %s39 = ssub.s32 512, 512
      %40 = vsyncadd [#allocation7], %s39
      %s41 = sshll.u32 [#allocation8], 4
      %s42 = int_to_ptr.vmem [resolvable:$true] %s41
      %47 = dma.hbm_to_vmem [thread:$0]  %s2, 512, %s42, [#allocation7], 128, 128, 8
    $region13: #{tpu_custom_call.1} parent=1 // pred_fallthru
      _
    // Predicated region
    $region14: #{tpu_custom_call.1} parent=1 // pred_check
      _
    $region15: #{tpu_custom_call.1} parent=1 // pred_check_branch
      %49 = sbr.rel (0) target = $region17
    $region16: #{tpu_custom_call.1} parent=1 // pred_region
      _
    $region17: #{tpu_custom_call.1} parent=1 // pred_fallthru
      _
    // Predicated region
    $region18: #{tpu_custom_call.1} parent=1 // pred_check
      _
    $region19: #{tpu_custom_call.1} parent=1 // pred_check_branch
      %51 = sbr.rel (0) target = $region21
    $region20: #{tpu_custom_call.1} parent=1 // pred_region
      %52 = dma.done [#allocation4], 256
    $region21: #{tpu_custom_call.1} parent=1 // pred_fallthru
      _
    // Predicated region
    $region22: #{tpu_custom_call.1} parent=1 // pred_check
      _
    $region23: #{tpu_custom_call.1} parent=1 // pred_check_branch
      %54 = sbr.rel (0) target = $region25
    $region24: #{tpu_custom_call.1} parent=1 // pred_region
      %55 = dma.done [#allocation7], 256
    $region25: #{tpu_custom_call.1} parent=1 // pred_fallthru
      _
    // Predicated region
    $region26: #{tpu_custom_call.1} parent=1 // pred_check
      _
    $region27: #{tpu_custom_call.1} parent=1 // pred_check_branch
      %57 = sbr.rel (0) target = $region29
    $region28: #{tpu_custom_call.1} parent=1 // pred_region
      %58 = dma.done [#allocation7], 512
    $region29: #{tpu_custom_call.1} parent=1 // pred_fallthru
      _
    %p59 = scmp.eq.s32.totalorder 0, 0
    // Predicated region
    $region30: #{tpu_custom_call.1} parent=1 // pred_check
      %p60 = pneg %p59
    $region31: #{tpu_custom_call.1} parent=1 // pred_check_branch
      %62 = sbr.rel (%p60) target = $region33
    $region32: #{tpu_custom_call.1} parent=1 // pred_region
      %v63 = vld [vmem:[#allocation3] sm:$0xff]
      %v64 = vld [vmem:[#allocation3 + $0x8] sm:$0xff]
      %v65 = vld [vmem:[#allocation8] sm:$0xff]
      %v66 = vld [vmem:[#allocation8 + $0x8] sm:$0xff]
      %v67 = vld [vmem:[#allocation8 + $0x10] sm:$0xff]
      %v68 = vld [vmem:[#allocation8 + $0x18] sm:$0xff]
      %vm69 = vcmask 130048
      %v71 = vsel %vm69, %v63, 0
      %73 = vmatprep.subr.mxu0 0.0
      %74 = vmatpush1.msra.mxu0 %v65
      %75 = vmatprep.subr.mxu0 0.0
      %76 = vmatpush1.msra.mxu0 %v66
      %77 = vmatprep.subr.mxu0 0.0
      %78 = vmatpush1.msra.mxu0 0.0
      %79 = vmatprep.subr.mxu0 0.0
      %80 = vmatpush1.msra.mxu0 0.0
      %81 = vmatprep.subr.mxu0 0.0
      %82 = vmatpush1.msra.mxu0 0.0
      %83 = vmatprep.subr.mxu0 0.0
      %84 = vmatpush1.msra.mxu0 0.0
      %85 = vmatprep.subr.mxu0 0.0
      %86 = vmatpush1.msra.mxu0 0.0
      %87 = vmatprep.subr.mxu0 0.0
      %88 = vmatpush1.msra.mxu0 0.0
      %89 = vmatprep.subr.mxu0 0.0
      %90 = vmatpush1.msra.mxu0 0.0
      %91 = vmatprep.subr.mxu0 0.0
      %92 = vmatpush1.msra.mxu0 0.0
      %93 = vmatprep.subr.mxu0 0.0
      %94 = vmatpush1.msra.mxu0 0.0
      %95 = vmatprep.subr.mxu0 0.0
      %96 = vmatpush1.msra.mxu0 0.0
      %97 = vmatprep.subr.mxu0 0.0
      %98 = vmatpush1.msra.mxu0 0.0
      %99 = vmatprep.subr.mxu0 0.0
      %100 = vmatpush1.msra.mxu0 0.0
      %101 = vmatprep.subr.mxu0 0.0
      %102 = vmatpush1.msra.mxu0 0.0
      %103 = vmatprep.subr.mxu0 0.0
      %104 = vmatpush1.msra.mxu0 0.0
      %105 = vmatprep.subr.mxu0 0.0
      %106 = vmatpush1.msra.mxu0 0.0
      %107 = vmatprep.subr.mxu0 0.0
      %108 = vmatpush1.msra.mxu0 0.0
      %109 = vmatprep.subr.mxu0 0.0
      %110 = vmatpush1.msra.mxu0 0.0
      %111 = vmatprep.subr.mxu0 0.0
      %112 = vmatpush1.msra.mxu0 0.0
      %113 = vmatprep.subr.mxu0 0.0
      %114 = vmatpush1.msra.mxu0 0.0
      %115 = vmatprep.subr.mxu0 0.0
      %116 = vmatpush1.msra.mxu0 0.0
      %117 = vmatprep.subr.mxu0 0.0
      %118 = vmatpush1.msra.mxu0 0.0
      %119 = vmatprep.subr.mxu0 0.0
      %120 = vmatpush1.msra.mxu0 0.0
      %121 = vmatprep.subr.mxu0 0.0
      %122 = vmatpush1.msra.mxu0 0.0
      %123 = vmatprep.subr.mxu0 0.0
      %124 = vmatpush1.msra.mxu0 0.0
      %125 = vmatprep.subr.mxu0 0.0
      %126 = vmatpush1.msra.mxu0 0.0
      %127 = vmatprep.subr.mxu0 0.0
      %128 = vmatpush1.msra.mxu0 0.0
      %129 = vmatprep.subr.mxu0 0.0
      %130 = vmatpush1.msra.mxu0 0.0
      %131 = vmatprep.subr.mxu0 0.0
      %132 = vmatpush1.msra.mxu0 0.0
      %133 = vmatprep.subr.mxu0 0.0
      %134 = vmatpush1.msra.mxu0 0.0
      %135 = vmatprep.subr.mxu0 0.0
      %136 = vmatpush1.msra.mxu0 0.0
      %137 = vmatprep.mubr.f32.mxu0 0.0
      %138 = vmatmul.mubr.f32.gmra.mrb[0].mxu0 %v71
      %v139 = vpop.f32.mrb[0].mxu0
      %v140 = vadd.f32 0.0, %v139
      %v141 = vpop.f32.mrb[0].mxu0
      %142 = vdwg.mxu0
      %v144 = vsel %vm69, %v64, 0
      %146 = vmatprep.subr.mxu0 0.0
      %147 = vmatpush1.msra.mxu0 %v67
      %148 = vmatprep.subr.mxu0 0.0
      %149 = vmatpush1.msra.mxu0 %v68
      %150 = vmatprep.subr.mxu0 0.0
      %151 = vmatpush1.msra.mxu0 0.0
      %152 = vmatprep.subr.mxu0 0.0
      %153 = vmatpush1.msra.mxu0 0.0
      %154 = vmatprep.subr.mxu0 0.0
      %155 = vmatpush1.msra.mxu0 0.0
      %156 = vmatprep.subr.mxu0 0.0
      %157 = vmatpush1.msra.mxu0 0.0
      %158 = vmatprep.subr.mxu0 0.0
      %159 = vmatpush1.msra.mxu0 0.0
      %160 = vmatprep.subr.mxu0 0.0
      %161 = vmatpush1.msra.mxu0 0.0
      %162 = vmatprep.subr.mxu0 0.0
      %163 = vmatpush1.msra.mxu0 0.0
      %164 = vmatprep.subr.mxu0 0.0
      %165 = vmatpush1.msra.mxu0 0.0
      %166 = vmatprep.subr.mxu0 0.0
      %167 = vmatpush1.msra.mxu0 0.0
      %168 = vmatprep.subr.mxu0 0.0
      %169 = vmatpush1.msra.mxu0 0.0
      %170 = vmatprep.subr.mxu0 0.0
      %171 = vmatpush1.msra.mxu0 0.0
      %172 = vmatprep.subr.mxu0 0.0
      %173 = vmatpush1.msra.mxu0 0.0
      %174 = vmatprep.subr.mxu0 0.0
      %175 = vmatpush1.msra.mxu0 0.0
      %176 = vmatprep.subr.mxu0 0.0
      %177 = vmatpush1.msra.mxu0 0.0
      %178 = vmatprep.subr.mxu0 0.0
      %179 = vmatpush1.msra.mxu0 0.0
      %180 = vmatprep.subr.mxu0 0.0
      %181 = vmatpush1.msra.mxu0 0.0
      %182 = vmatprep.subr.mxu0 0.0
      %183 = vmatpush1.msra.mxu0 0.0
      %184 = vmatprep.subr.mxu0 0.0
      %185 = vmatpush1.msra.mxu0 0.0
      %186 = vmatprep.subr.mxu0 0.0
      %187 = vmatpush1.msra.mxu0 0.0
      %188 = vmatprep.subr.mxu0 0.0
      %189 = vmatpush1.msra.mxu0 0.0
      %190 = vmatprep.subr.mxu0 0.0
      %191 = vmatpush1.msra.mxu0 0.0
      %192 = vmatprep.subr.mxu0 0.0
      %193 = vmatpush1.msra.mxu0 0.0
      %194 = vmatprep.subr.mxu0 0.0
      %195 = vmatpush1.msra.mxu0 0.0
      %196 = vmatprep.subr.mxu0 0.0
      %197 = vmatpush1.msra.mxu0 0.0
      %198 = vmatprep.subr.mxu0 0.0
      %199 = vmatpush1.msra.mxu0 0.0
      %200 = vmatprep.subr.mxu0 0.0
      %201 = vmatpush1.msra.mxu0 0.0
      %202 = vmatprep.subr.mxu0 0.0
      %203 = vmatpush1.msra.mxu0 0.0
      %204 = vmatprep.subr.mxu0 0.0
      %205 = vmatpush1.msra.mxu0 0.0
      %206 = vmatprep.subr.mxu0 0.0
      %207 = vmatpush1.msra.mxu0 0.0
      %208 = vmatprep.subr.mxu0 0.0
      %209 = vmatpush1.msra.mxu0 0.0
      %210 = vmatprep.mubr.f32.mxu0 0.0
      %211 = vmatmul.mubr.f32.gmra.mrb[0].mxu0 %v144
      %v212 = vpop.f32.mrb[0].mxu0
      %v213 = vadd.f32 0.0, %v212
      %v214 = vpop.f32.mrb[0].mxu0
      %215 = vdwg.mxu0
      %vm216 = vcmask 261120
      %217 = vst.msk [vmem:[#allocation2] sm:$0xff] %vm216, %v140
      %218 = vst.msk [vmem:[#allocation2 + $0x8] sm:$0xff] %vm216, %v213
    $region33: #{tpu_custom_call.1} parent=1 // pred_fallthru
      _
    %v219 = vld [vmem:[#allocation6] sm:$0xff]
    %v220 = vld [vmem:[#allocation6 + $0x8] sm:$0xff]
    %v221 = vld [vmem:[#allocation2] sm:$0xff]
    %v222 = vld [vmem:[#allocation2 + $0x8] sm:$0xff]
    %v223 = vld [vmem:[%s3] sm:$0x1]
    %v225 = vlaneseq
    %v226 = vshrl.u32 %v225, 7
    %v227 = vsub.s32 0, %v226
    %v228 = vrot.slane %v223, %v227
    %vm230 = vcmask 64512
    %v232 = vsel %vm230, %v219, 0
    %234 = vmatprep.subr.mxu0 0.0
    %235 = vmatpush1.msra.mxu0 %v221
    %236 = vmatprep.subr.mxu0 0.0
    %237 = vmatpush1.msra.mxu0 0.0
    %238 = vmatprep.subr.mxu0 0.0
    %239 = vmatpush1.msra.mxu0 0.0
    %240 = vmatprep.subr.mxu0 0.0
    %241 = vmatpush1.msra.mxu0 0.0
    %242 = vmatprep.subr.mxu0 0.0
    %243 = vmatpush1.msra.mxu0 0.0
    %244 = vmatprep.subr.mxu0 0.0
    %245 = vmatpush1.msra.mxu0 0.0
    %246 = vmatprep.subr.mxu0 0.0
    %247 = vmatpush1.msra.mxu0 0.0
    %248 = vmatprep.subr.mxu0 0.0
    %249 = vmatpush1.msra.mxu0 0.0
    %250 = vmatprep.subr.mxu0 0.0
    %251 = vmatpush1.msra.mxu0 0.0
    %252 = vmatprep.subr.mxu0 0.0
    %253 = vmatpush1.msra.mxu0 0.0
    %254 = vmatprep.subr.mxu0 0.0
    %255 = vmatpush1.msra.mxu0 0.0
    %256 = vmatprep.subr.mxu0 0.0
    %257 = vmatpush1.msra.mxu0 0.0
    %258 = vmatprep.subr.mxu0 0.0
    %259 = vmatpush1.msra.mxu0 0.0
    %260 = vmatprep.subr.mxu0 0.0
    %261 = vmatpush1.msra.mxu0 0.0
    %262 = vmatprep.subr.mxu0 0.0
    %263 = vmatpush1.msra.mxu0 0.0
    %264 = vmatprep.subr.mxu0 0.0
    %265 = vmatpush1.msra.mxu0 0.0
    %266 = vmatprep.subr.mxu0 0.0
    %267 = vmatpush1.msra.mxu0 0.0
    %268 = vmatprep.subr.mxu0 0.0
    %269 = vmatpush1.msra.mxu0 0.0
    %270 = vmatprep.subr.mxu0 0.0
    %271 = vmatpush1.msra.mxu0 0.0
    %272 = vmatprep.subr.mxu0 0.0
    %273 = vmatpush1.msra.mxu0 0.0
    %274 = vmatprep.subr.mxu0 0.0
    %275 = vmatpush1.msra.mxu0 0.0
    %276 = vmatprep.subr.mxu0 0.0
    %277 = vmatpush1.msra.mxu0 0.0
    %278 = vmatprep.subr.mxu0 0.0
    %279 = vmatpush1.msra.mxu0 0.0
    %280 = vmatprep.subr.mxu0 0.0
    %281 = vmatpush1.msra.mxu0 0.0
    %282 = vmatprep.subr.mxu0 0.0
    %283 = vmatpush1.msra.mxu0 0.0
    %284 = vmatprep.subr.mxu0 0.0
    %285 = vmatpush1.msra.mxu0 0.0
    %286 = vmatprep.subr.mxu0 0.0
    %287 = vmatpush1.msra.mxu0 0.0
    %288 = vmatprep.subr.mxu0 0.0
    %289 = vmatpush1.msra.mxu0 0.0
    %290 = vmatprep.subr.mxu0 0.0
    %291 = vmatpush1.msra.mxu0 0.0
    %292 = vmatprep.subr.mxu0 0.0
    %293 = vmatpush1.msra.mxu0 0.0
    %294 = vmatprep.subr.mxu0 0.0
    %295 = vmatpush1.msra.mxu0 0.0
    %296 = vmatprep.subr.mxu0 0.0
    %297 = vmatpush1.msra.mxu0 0.0
    %298 = vmatprep.mubr.f32.mxu0 0.0
    %299 = vmatmul.mubr.f32.gmra.mrb[0].mxu0 %v232
    %v300 = vpop.f32.mrb[0].mxu0
    %v301 = vadd.f32 %v228, %v300
    %v302 = vpop.f32.mrb[0].mxu0
    %303 = vdwg.mxu0
    %v305 = vsel %vm230, %v220, 0
    %307 = vmatprep.subr.mxu0 0.0
    %308 = vmatpush1.msra.mxu0 %v222
    %309 = vmatprep.subr.mxu0 0.0
    %310 = vmatpush1.msra.mxu0 0.0
    %311 = vmatprep.subr.mxu0 0.0
    %312 = vmatpush1.msra.mxu0 0.0
    %313 = vmatprep.subr.mxu0 0.0
    %314 = vmatpush1.msra.mxu0 0.0
    %315 = vmatprep.subr.mxu0 0.0
    %316 = vmatpush1.msra.mxu0 0.0
    %317 = vmatprep.subr.mxu0 0.0
    %318 = vmatpush1.msra.mxu0 0.0
    %319 = vmatprep.subr.mxu0 0.0
    %320 = vmatpush1.msra.mxu0 0.0
    %321 = vmatprep.subr.mxu0 0.0
    %322 = vmatpush1.msra.mxu0 0.0
    %323 = vmatprep.subr.mxu0 0.0
    %324 = vmatpush1.msra.mxu0 0.0
    %325 = vmatprep.subr.mxu0 0.0
    %326 = vmatpush1.msra.mxu0 0.0
    %327 = vmatprep.subr.mxu0 0.0
    %328 = vmatpush1.msra.mxu0 0.0
    %329 = vmatprep.subr.mxu0 0.0
    %330 = vmatpush1.msra.mxu0 0.0
    %331 = vmatprep.subr.mxu0 0.0
    %332 = vmatpush1.msra.mxu0 0.0
    %333 = vmatprep.subr.mxu0 0.0
    %334 = vmatpush1.msra.mxu0 0.0
    %335 = vmatprep.subr.mxu0 0.0
    %336 = vmatpush1.msra.mxu0 0.0
    %337 = vmatprep.subr.mxu0 0.0
    %338 = vmatpush1.msra.mxu0 0.0
    %339 = vmatprep.subr.mxu0 0.0
    %340 = vmatpush1.msra.mxu0 0.0
    %341 = vmatprep.subr.mxu0 0.0
    %342 = vmatpush1.msra.mxu0 0.0
    %343 = vmatprep.subr.mxu0 0.0
    %344 = vmatpush1.msra.mxu0 0.0
    %345 = vmatprep.subr.mxu0 0.0
    %346 = vmatpush1.msra.mxu0 0.0
    %347 = vmatprep.subr.mxu0 0.0
    %348 = vmatpush1.msra.mxu0 0.0
    %349 = vmatprep.subr.mxu0 0.0
    %350 = vmatpush1.msra.mxu0 0.0
    %351 = vmatprep.subr.mxu0 0.0
    %352 = vmatpush1.msra.mxu0 0.0
    %353 = vmatprep.subr.mxu0 0.0
    %354 = vmatpush1.msra.mxu0 0.0
    %355 = vmatprep.subr.mxu0 0.0
    %356 = vmatpush1.msra.mxu0 0.0
    %357 = vmatprep.subr.mxu0 0.0
    %358 = vmatpush1.msra.mxu0 0.0
    %359 = vmatprep.subr.mxu0 0.0
    %360 = vmatpush1.msra.mxu0 0.0
    %361 = vmatprep.subr.mxu0 0.0
    %362 = vmatpush1.msra.mxu0 0.0
    %363 = vmatprep.subr.mxu0 0.0
    %364 = vmatpush1.msra.mxu0 0.0
    %365 = vmatprep.subr.mxu0 0.0
    %366 = vmatpush1.msra.mxu0 0.0
    %367 = vmatprep.subr.mxu0 0.0
    %368 = vmatpush1.msra.mxu0 0.0
    %369 = vmatprep.subr.mxu0 0.0
    %370 = vmatpush1.msra.mxu0 0.0
    %371 = vmatprep.mubr.f32.mxu0 0.0
    %372 = vmatmul.mubr.f32.gmra.mrb[0].mxu0 %v305
    %v373 = vpop.f32.mrb[0].mxu0
    %v374 = vadd.f32 %v228, %v373
    %v375 = vpop.f32.mrb[0].mxu0
    %376 = vdwg.mxu0
    %v377 = vmax.f32 %v301, 0.0
    %v378 = vmax.f32 %v374, 0.0
    %v379 = vmin.f32 %v377, 1.0
    %v380 = vmin.f32 %v378, 1.0
    %vm381 = vcmask 261120
    %v382 = vsel %vm381, %v379, 0.0
    %383 = vadd.xlane.f32.xlu0 %v382
    %v384 = vpop.xlane.xlu0 %383
    %v385 = vsel %vm381, %v380, 0.0
    %386 = vadd.xlane.f32.xlu0 %v385
    %v387 = vpop.xlane.xlu0 %386
    %v388 = vrcp.pop %v384
    %v389 = vrcp.pop %v387
    %v390 = vmul.f32 %v379, %v388
    %v391 = vmul.f32 %v380, %v389
    %392 = vst.msk [vmem:[#allocation9] sm:$0xff] %vm381, %v390
    %393 = vst.msk [vmem:[#allocation9 + $0x8] sm:$0xff] %vm381, %v391
    // Predicated region
    $region34: #{tpu_custom_call.1} parent=1 // pred_check
      _
    $region35: #{tpu_custom_call.1} parent=1 // pred_check_branch
      %395 = sbr.rel (0) target = $region37
    $region36: #{tpu_custom_call.1} parent=1 // pred_region
      %s397 = ssub.s32 256, 256
      %398 = vsyncadd [#allocation5], %s397
      %s399 = sshll.u32 [#allocation9], 4
      %s400 = int_to_ptr.vmem [resolvable:$true] %s399
      %405 = dma.vmem_to_hbm [thread:$0]  %s400, 256, %s4, [#allocation5], 128, 128, 8
    $region37: #{tpu_custom_call.1} parent=1 // pred_fallthru
      _
    // Predicated region
    $region38: #{tpu_custom_call.1} parent=1 // pred_check
      _
    $region39: #{tpu_custom_call.1} parent=1 // pred_check_branch
      %407 = sbr.rel (0) target = $region41
    $region40: #{tpu_custom_call.1} parent=1 // pred_region
      %408 = dma.done [#allocation5], 256
    $region41: #{tpu_custom_call.1} parent=1 // pred_fallthru
      _
    %409 = vsyncpa [#allocation4], 1
    %410 = vsyncpa [#allocation7], 1
    %411 = vsyncpa [#allocation5], 1

</llo_original>
